<compile_context>
chip_gen: v7x
topology: tpu7x:2x2x1
jax: 0.10.0
libtpu: 0.0.40
codegen_flags: <defaults>
</compile_context>

<pallas_src>
import functools

import jax
import jax.numpy as jnp
from jax.experimental import pallas as pl
from jax.experimental.pallas import tpu as pltpu


def _make_fused_kernel(T):
    """Fused: conv1 -> ReLU -> BN1 -> conv2 -> ReLU -> BN2 -> (+x)."""

    def kernel(x_ref, w1_ref, p1_ref, w2_ref, p2_ref, o_ref):
        x = x_ref[0]                                        # (T, Cin) f32

        def unfold(v):
            # (T, C) -> (T, 3C) = [v[t-1] | v[t] | v[t+1]], zero-filled at borders.
            row = jax.lax.broadcasted_iota(jnp.int32, v.shape, 0)
            prev = jnp.where(row >= 1, pltpu.roll(v, shift=1, axis=0), 0.0)
            nxt = jnp.where(row < T - 1, pltpu.roll(v, shift=T - 1, axis=0), 0.0)
            return jnp.concatenate([prev, v, nxt], axis=-1)

        # ---- layer 1: Conv1d (single contraction) -> ReLU -> folded BN ----
        p1 = p1_ref[...]                                    # (3, Ci): bias, scale, shift
        xu = unfold(x).astype(jnp.bfloat16)                 # (T, 3*Cin) bf16
        y1 = jnp.dot(xu, w1_ref[...], preferred_element_type=jnp.float32) + p1[0:1]
        h = jnp.maximum(y1, 0.0) * p1[1:2] + p1[2:3]        # (T, Ci) f32

        # ---- layer 2: Conv1d -> ReLU -> folded BN -> residual ----
        p2 = p2_ref[...]                                    # (3, Cout)
        hu = unfold(h).astype(jnp.bfloat16)                 # (T, 3*Ci) bf16
        y2 = jnp.dot(hu, w2_ref[...], preferred_element_type=jnp.float32) + p2[0:1]
        out = jnp.maximum(y2, 0.0) * p2[1:2] + p2[2:3] + x  # residual in f32
        o_ref[0] = out.astype(o_ref.dtype)

    return kernel


def _fold_bn(b, gamma, beta, mean, var, eps=1e-5):
    """Pack (bias, bn_scale, bn_shift) rows into one (3, C) f32 array."""
    inv_std = 1.0 / jnp.sqrt(var.astype(jnp.float32) + eps)
    scale = gamma.astype(jnp.float32) * inv_std
    shift = beta.astype(jnp.float32) - mean.astype(jnp.float32) * scale
    return jnp.stack([b.astype(jnp.float32), scale, shift], axis=0)


@functools.partial(jax.jit, static_argnames=("dilation",))
def tdnn_block(x, params, *, dilation=1):
    """TDNNBlock.forward: out = tdnn2(tdnn1(x)) + x, as one fused Pallas kernel."""
    assert dilation == 1, "residual path requires k=3, stride=1, padding=1, dilation=1"
    B, T, Cin = x.shape
    K, Cin1, Ci = params["w1"].shape
    K2, Ci2, Cout = params["w2"].shape
    assert K == 3 and K2 == 3 and Cin1 == Cin and Ci2 == Ci
    assert Cout == Cin, "residual add requires inplanes == planes"

    # Unfolded weights: rows ordered [k=0 | k=1 | k=2]; bf16 for the MXU.
    w1u = params["w1"].reshape(K * Cin, Ci).astype(jnp.bfloat16)
    w2u = params["w2"].reshape(K * Ci, Cout).astype(jnp.bfloat16)
    p1 = _fold_bn(params["b1"], params["g1"], params["be1"], params["m1"], params["v1"])
    p2 = _fold_bn(params["b2"], params["g2"], params["be2"], params["m2"], params["v2"])

    return pl.pallas_call(
        _make_fused_kernel(T),
        out_shape=jax.ShapeDtypeStruct((B, T, Cout), x.dtype),
        grid=(B,),
        in_specs=[
            pl.BlockSpec((1, T, Cin), lambda b: (b, 0, 0)),
            pl.BlockSpec((K * Cin, Ci), lambda b: (0, 0)),
            pl.BlockSpec((3, Ci), lambda b: (0, 0)),
            pl.BlockSpec((K * Ci, Cout), lambda b: (0, 0)),
            pl.BlockSpec((3, Cout), lambda b: (0, 0)),
        ],
        out_specs=pl.BlockSpec((1, T, Cout), lambda b: (b, 0, 0)),
        compiler_params=pltpu.CompilerParams(
            dimension_semantics=("parallel",),
            vmem_limit_bytes=32 * 1024 * 1024,
        ),
    )(x.astype(jnp.float32), w1u, p1, w2u, p2)


def init_params(key, inplanes, planes, downsample=None):
    inter = planes // downsample if isinstance(downsample, int) else planes
    K = 3
    keys = jax.random.split(key, 8)

    def conv_init(k, cin, cout):
        # deterministic small weights, shape (K, Cin, Cout)
        return 0.1 * jax.random.normal(k, (K, cin, cout), jnp.float32)

    return {
        "w1": conv_init(keys[0], inplanes, inter),
        "b1": 0.01 * jax.random.normal(keys[1], (inter,), jnp.float32),
        "g1": 1.0 + 0.05 * jax.random.normal(keys[2], (inter,), jnp.float32),
        "be1": 0.01 * jax.random.normal(keys[3], (inter,), jnp.float32),
        "m1": jnp.zeros((inter,), jnp.float32),
        "v1": jnp.ones((inter,), jnp.float32),
        "w2": conv_init(keys[4], inter, planes),
        "b2": 0.01 * jax.random.normal(keys[5], (planes,), jnp.float32),
        "g2": 1.0 + 0.05 * jax.random.normal(keys[6], (planes,), jnp.float32),
        "be2": 0.01 * jax.random.normal(keys[7], (planes,), jnp.float32),
        "m2": jnp.zeros((planes,), jnp.float32),
        "v2": jnp.ones((planes,), jnp.float32),
    }


def _reference(x, params, eps=1e-5):
    """Pure-JAX f32 reference of the fused block (for a sanity check)."""

    def layer(v, w, b, g, be, m, var):
        B, T, _ = v.shape
        K = w.shape[0]
        vpad = jnp.pad(v, ((0, 0), (1, 1), (0, 0)))
        y = sum(jnp.einsum("btc,cd->btd", vpad[:, k:k + T, :], w[k]) for k in range(K)) + b
        h = jnp.maximum(y, 0.0)
        scale = g / jnp.sqrt(var + eps)
        return h * scale + (be - m * scale)

    h = layer(x, params["w1"], params["b1"], params["g1"], params["be1"],
              params["m1"], params["v1"])
    o = layer(h, params["w2"], params["b2"], params["g2"], params["be2"],
              params["m2"], params["v2"])
    return o + x


if __name__ == "__main__":
    B, T, C = 2, 16, 32            # batch, seq_len, channels (inplanes == planes)
    key = jax.random.PRNGKey(0)
    kx, kp = jax.random.split(key)
    x = jax.random.normal(kx, (B, T, C), jnp.float32)   # (B, T, C) layout
    params = init_params(kp, inplanes=C, planes=C, downsample=None)

    out = tdnn_block(x, params)
    jax.block_until_ready(out)
    assert out.shape == (B, T, C), out.shape

    ref = _reference(x, params)
    err = float(jnp.max(jnp.abs(out - ref)))
    assert err < 0.15, f"max abs err {err}"   # loose tolerance: bf16 MXU operands
    print("KERNEL_OK")
</pallas_src>

<mosaic_0001>
module attributes {stable_mosaic.version = 11 : i64} {
  func.func @kernel(%arg0: i32, %arg1: memref<1x16x32xf32, #tpu.memory_space<vmem>>, %arg2: memref<96x32xbf16, #tpu.memory_space<vmem>>, %arg3: memref<3x32xf32, #tpu.memory_space<vmem>>, %arg4: memref<96x32xbf16, #tpu.memory_space<vmem>>, %arg5: memref<3x32xf32, #tpu.memory_space<vmem>>, %arg6: memref<1x16x32xf32, #tpu.memory_space<vmem>>) attributes {dimension_semantics = [#tpu.dimension_semantics<parallel>], iteration_bounds = array<i64: 2>, scalar_prefetch = 0 : i64, scratch_operands = 0 : i64, tpu.core_type = #tpu.core_type<tc>, window_params = [{transform_indices = @transform_0, window_bounds = array<i64: 1, 16, 32>}, {pipeline_mode = #tpu.pipeline_mode<synchronous>, transform_indices = @transform_1, window_bounds = array<i64: 96, 32>}, {pipeline_mode = #tpu.pipeline_mode<synchronous>, transform_indices = @transform_2, window_bounds = array<i64: 3, 32>}, {pipeline_mode = #tpu.pipeline_mode<synchronous>, transform_indices = @transform_3, window_bounds = array<i64: 96, 32>}, {pipeline_mode = #tpu.pipeline_mode<synchronous>, transform_indices = @transform_4, window_bounds = array<i64: 3, 32>}, {transform_indices = @transform_5, window_bounds = array<i64: 1, 16, 32>}]} {
    %c0 = arith.constant 0 : index
    %c0_0 = arith.constant 0 : index
    %c0_1 = arith.constant 0 : index
    %0 = vector.load %arg1[%c0, %c0_0, %c0_1] : memref<1x16x32xf32, #tpu.memory_space<vmem>>, vector<1x16x32xf32>
    %1 = vector.shape_cast %0 : vector<1x16x32xf32> to vector<16x32xf32>
    %c0_2 = arith.constant 0 : index
    %c0_3 = arith.constant 0 : index
    %2 = vector.load %arg3[%c0_2, %c0_3] : memref<3x32xf32, #tpu.memory_space<vmem>>, vector<3x32xf32>
    %3 = tpu.iota {dimensions = array<i32: 0>} : vector<16x32xi32>
    %c1_i32 = arith.constant 1 : i32
    %4 = vector.broadcast %c1_i32 : i32 to vector<16x32xi32>
    %5 = arith.cmpi sge, %3, %4 : vector<16x32xi32>
    %c1_i32_4 = arith.constant 1 : i32
    %6 = tpu.dynamic_rotate %1 by %c1_i32_4 dim 0 : vector<16x32xf32>, i32 -> vector<16x32xf32>
    %cst = arith.constant 0.000000e+00 : f32
    %7 = vector.broadcast %cst : f32 to vector<16x32xf32>
    %8 = arith.select %5, %6, %7 : vector<16x32xi1>, vector<16x32xf32>
    %c15_i32 = arith.constant 15 : i32
    %9 = vector.broadcast %c15_i32 : i32 to vector<16x32xi32>
    %10 = arith.cmpi slt, %3, %9 : vector<16x32xi32>
    %c15_i32_5 = arith.constant 15 : i32
    %11 = tpu.dynamic_rotate %1 by %c15_i32_5 dim 0 : vector<16x32xf32>, i32 -> vector<16x32xf32>
    %cst_6 = arith.constant 0.000000e+00 : f32
    %12 = vector.broadcast %cst_6 : f32 to vector<16x32xf32>
    %13 = arith.select %10, %11, %12 : vector<16x32xi1>, vector<16x32xf32>
    %14 = tpu.concatenate %8, %1, %13 in 1 : vector<16x32xf32>, vector<16x32xf32>, vector<16x32xf32> -> vector<16x96xf32>
    %15 = arith.truncf %14 : vector<16x96xf32> to vector<16x96xbf16>
    %c0_7 = arith.constant 0 : index
    %c0_8 = arith.constant 0 : index
    %16 = vector.load %arg2[%c0_7, %c0_8] : memref<96x32xbf16, #tpu.memory_space<vmem>>, vector<96x32xbf16>
    %cst_9 = arith.constant dense<0.000000e+00> : vector<16x32xf32>
    %17 = tpu.matmul %15, %16, %cst_9 {dimension_numbers = #tpu.dot_dimension_numbers<[1], [0], [0], [1], [0, 0, 1, 1], [], []>} : vector<16x96xbf16>, vector<96x32xbf16>, vector<16x32xf32> -> vector<16x32xf32>
    %18 = vector.extract_strided_slice %2 {offsets = [0, 0], sizes = [1, 32], strides = [1, 1]} : vector<3x32xf32> to vector<1x32xf32>
    %19 = vector.broadcast %18 : vector<1x32xf32> to vector<16x32xf32>
    %20 = arith.addf %17, %19 : vector<16x32xf32>
    %cst_10 = arith.constant 0.000000e+00 : f32
    %21 = vector.broadcast %cst_10 : f32 to vector<16x32xf32>
    %22 = arith.maximumf %20, %21 : vector<16x32xf32>
    %23 = vector.extract_strided_slice %2 {offsets = [1, 0], sizes = [1, 32], strides = [1, 1]} : vector<3x32xf32> to vector<1x32xf32>
    %24 = vector.broadcast %23 : vector<1x32xf32> to vector<16x32xf32>
    %25 = arith.mulf %22, %24 : vector<16x32xf32>
    %26 = vector.extract_strided_slice %2 {offsets = [2, 0], sizes = [1, 32], strides = [1, 1]} : vector<3x32xf32> to vector<1x32xf32>
    %27 = vector.broadcast %26 : vector<1x32xf32> to vector<16x32xf32>
    %28 = arith.addf %25, %27 : vector<16x32xf32>
    %c0_11 = arith.constant 0 : index
    %c0_12 = arith.constant 0 : index
    %29 = vector.load %arg5[%c0_11, %c0_12] : memref<3x32xf32, #tpu.memory_space<vmem>>, vector<3x32xf32>
    %30 = tpu.iota {dimensions = array<i32: 0>} : vector<16x32xi32>
    %c1_i32_13 = arith.constant 1 : i32
    %31 = vector.broadcast %c1_i32_13 : i32 to vector<16x32xi32>
    %32 = arith.cmpi sge, %30, %31 : vector<16x32xi32>
    %c1_i32_14 = arith.constant 1 : i32
    %33 = tpu.dynamic_rotate %28 by %c1_i32_14 dim 0 : vector<16x32xf32>, i32 -> vector<16x32xf32>
    %cst_15 = arith.constant 0.000000e+00 : f32
    %34 = vector.broadcast %cst_15 : f32 to vector<16x32xf32>
    %35 = arith.select %32, %33, %34 : vector<16x32xi1>, vector<16x32xf32>
    %c15_i32_16 = arith.constant 15 : i32
    %36 = vector.broadcast %c15_i32_16 : i32 to vector<16x32xi32>
    %37 = arith.cmpi slt, %30, %36 : vector<16x32xi32>
    %c15_i32_17 = arith.constant 15 : i32
    %38 = tpu.dynamic_rotate %28 by %c15_i32_17 dim 0 : vector<16x32xf32>, i32 -> vector<16x32xf32>
    %cst_18 = arith.constant 0.000000e+00 : f32
    %39 = vector.broadcast %cst_18 : f32 to vector<16x32xf32>
    %40 = arith.select %37, %38, %39 : vector<16x32xi1>, vector<16x32xf32>
    %41 = tpu.concatenate %35, %28, %40 in 1 : vector<16x32xf32>, vector<16x32xf32>, vector<16x32xf32> -> vector<16x96xf32>
    %42 = arith.truncf %41 : vector<16x96xf32> to vector<16x96xbf16>
    %c0_19 = arith.constant 0 : index
    %c0_20 = arith.constant 0 : index
    %43 = vector.load %arg4[%c0_19, %c0_20] : memref<96x32xbf16, #tpu.memory_space<vmem>>, vector<96x32xbf16>
    %cst_21 = arith.constant dense<0.000000e+00> : vector<16x32xf32>
    %44 = tpu.matmul %42, %43, %cst_21 {dimension_numbers = #tpu.dot_dimension_numbers<[1], [0], [0], [1], [0, 0, 1, 1], [], []>} : vector<16x96xbf16>, vector<96x32xbf16>, vector<16x32xf32> -> vector<16x32xf32>
    %45 = vector.extract_strided_slice %29 {offsets = [0, 0], sizes = [1, 32], strides = [1, 1]} : vector<3x32xf32> to vector<1x32xf32>
    %46 = vector.broadcast %45 : vector<1x32xf32> to vector<16x32xf32>
    %47 = arith.addf %44, %46 : vector<16x32xf32>
    %cst_22 = arith.constant 0.000000e+00 : f32
    %48 = vector.broadcast %cst_22 : f32 to vector<16x32xf32>
    %49 = arith.maximumf %47, %48 : vector<16x32xf32>
    %50 = vector.extract_strided_slice %29 {offsets = [1, 0], sizes = [1, 32], strides = [1, 1]} : vector<3x32xf32> to vector<1x32xf32>
    %51 = vector.broadcast %50 : vector<1x32xf32> to vector<16x32xf32>
    %52 = arith.mulf %49, %51 : vector<16x32xf32>
    %53 = vector.extract_strided_slice %29 {offsets = [2, 0], sizes = [1, 32], strides = [1, 1]} : vector<3x32xf32> to vector<1x32xf32>
    %54 = vector.broadcast %53 : vector<1x32xf32> to vector<16x32xf32>
    %55 = arith.addf %52, %54 : vector<16x32xf32>
    %56 = arith.addf %55, %1 : vector<16x32xf32>
    %c0_23 = arith.constant 0 : index
    %c0_24 = arith.constant 0 : index
    %c0_25 = arith.constant 0 : index
    %57 = vector.load %arg6[%c0_23, %c0_24, %c0_25] : memref<1x16x32xf32, #tpu.memory_space<vmem>>, vector<1x16x32xf32>
    %58 = vector.shape_cast %57 : vector<1x16x32xf32> to vector<16x32xf32>
    %59 = vector.shape_cast %56 : vector<16x32xf32> to vector<1x16x32xf32>
    tpu.vector_store %arg6[%c0_23, %c0_24, %c0_25], %59 {strides = array<i32>} : memref<1x16x32xf32, #tpu.memory_space<vmem>>, vector<1x16x32xf32>,
    return
  }
  func.func @transform_0(%arg0: i32) -> (i32, i32, i32) {
    %c0_i32 = arith.constant 0 : i32
    %c0_i32_0 = arith.constant 0 : i32
    %c0_i32_1 = arith.constant 0 : i32
    return %arg0, %c0_i32, %c0_i32_0 : i32, i32, i32
  }
  func.func @transform_1(%arg0: i32) -> (i32, i32) {
    %c0_i32 = arith.constant 0 : i32
    %c0_i32_0 = arith.constant 0 : i32
    %c0_i32_1 = arith.constant 0 : i32
    return %c0_i32, %c0_i32_0 : i32, i32
  }
  func.func @transform_2(%arg0: i32) -> (i32, i32) {
    %c0_i32 = arith.constant 0 : i32
    %c0_i32_0 = arith.constant 0 : i32
    %c0_i32_1 = arith.constant 0 : i32
    return %c0_i32, %c0_i32_0 : i32, i32
  }
  func.func @transform_3(%arg0: i32) -> (i32, i32) {
    %c0_i32 = arith.constant 0 : i32
    %c0_i32_0 = arith.constant 0 : i32
    %c0_i32_1 = arith.constant 0 : i32
    return %c0_i32, %c0_i32_0 : i32, i32
  }
  func.func @transform_4(%arg0: i32) -> (i32, i32) {
    %c0_i32 = arith.constant 0 : i32
    %c0_i32_0 = arith.constant 0 : i32
    %c0_i32_1 = arith.constant 0 : i32
    return %c0_i32, %c0_i32_0 : i32, i32
  }
  func.func @transform_5(%arg0: i32) -> (i32, i32, i32) {
    %c0_i32 = arith.constant 0 : i32
    %c0_i32_0 = arith.constant 0 : i32
    %c0_i32_1 = arith.constant 0 : i32
    return %arg0, %c0_i32, %c0_i32_0 : i32, i32, i32
  }
}

</mosaic_0001>

<llo_original>
// kernel: tdnn_block.1
$region0: #{tdnn_block.1}
  #allocation0 [shape = 'u32[]', space=smem, size = 0x4, offset = 0x4, fixed_abs, tag = 'smem constant byte address 0x4 - core index']
  #allocation1 [shape = 'u32[144,128]{1,0:T(1,128)}', space=vmem, size = 0x12000, scoped, tag = 'internal scratch']
  %s0 = inlined_call_operand.vmem [shape: f32[2,16,32], index: 0, kind: input, shape index: {}]
  %s1 = inlined_call_operand.vmem [shape: bf16[96,32], index: 1, kind: input, shape index: {}]
  %s2 = inlined_call_operand.vmem [shape: f32[3,32], index: 2, kind: input, shape index: {}]
  %s3 = inlined_call_operand.vmem [shape: bf16[96,32], index: 3, kind: input, shape index: {}]
  %s4 = inlined_call_operand.vmem [shape: f32[3,32], index: 4, kind: input, shape index: {}]
  %s5 = inlined_call_operand.hbm [shape: f32[2,16,32], index: 5, kind: output, shape index: {}]
  %s6 = sld [smem:[#allocation0]]
  $region53: #{tdnn_block.1} parent=0
    _
  %s8 = ssub.s32 1, %s6
  %s9 = scalar_select 0, %s8, %s6
  $region1: #{tdnn_block.1} parent=0
    #allocation2 [shape = 'u8[16384]{0}', space=vmem, size = 0x4000, scoped, tag = 'output window, operand 0']
    #allocation3 [shape = 's32[2]{0}', space=sflag, size = 0x8, scoped, tag = 'scoped memory for tdnn_block.1']
    %10 = vsyncpa [#allocation3], 0
    %s11 = scalar_lea.sflag [#allocation3], 1
    %12 = vsyncpa %s11, 0
    loop: start=0, step=1, limit=4
    $region2: #{tdnn_block.1} parent=1 // loop_pre_header
      _
    $region3: #{tdnn_block.1} parent=1 // loop_header
      %s14 = sphi 0, %s18
      %p15 = scmp.ge.s32.totalorder %s14, 4
      %s24 = sphi 0, %s26
      %s27 = sphi 0, %s24
      %s28 = sphi 0, %s27
      %s44 = sphi 0, %s28
      %s48 = sphi 0, %s48
      %s50 = sphi 0, %s48
      %s51 = sphi 0, %s50
      %s65 = sphi 0, %s51
      %s69 = sphi 0, %s69
      %s71 = sphi 0, %s69
      %s72 = sphi 0, %s71
      %s86 = sphi 0, %s72
      %s90 = sphi 0, %s90
      %s92 = sphi 0, %s90
      %s93 = sphi 0, %s92
      %s107 = sphi 0, %s93
      %s111 = sphi 0, %s111
      %s113 = sphi 0, %s111
      %s114 = sphi 0, %s113
      %s128 = sphi 0, %s114
      %s134 = sphi 0, %s136
      %s137 = sphi 0, %s134
      %s138 = sphi 0, %s137
      %s154 = sphi 0, %s138
    $region4: #{tdnn_block.1} parent=1 // loop_header_branch
      %17 = sbr.rel (%p15) target = $region8
    $region5: #{tdnn_block.1} parent=1 // loop_body
      %s19 = ssub.s32 %s14, 1
      %s20 = ssub.s32 %s14, 2
      %s21 = sadd.s32 %s14, 1
      %s22 = ssub.s32 %s14, %s21
      %p23 = scmp.eq.s32.totalorder %s22, 0
      %s25 = sadd.s32 %s24, 1
      %s26 = scalar_select %p23, %s24, %s25
      %p29 = pneg %p23
      %p30 = scmp.eq.s32.totalorder %s14, 1
      %p31 = por %p29, %p30
      %p32 = scmp.ne.s32.totalorder %s24, %s27
      %p33 = scmp.eq.s32.totalorder %s14, 0
      %p34 = por %p32, %p33
      %p35 = scmp.ne.s32.totalorder %s24, %s27
      %p36 = scmp.eq.s32.totalorder %s19, 1
      %p37 = por %p35, %p36
      %p38 = scmp.ne.s32.totalorder %s27, %s28
      %p39 = scmp.eq.s32.totalorder %s19, 0
      %p40 = por %p38, %p39
      %p41 = scmp.ne.s32.totalorder %s27, %s28
      %p42 = scmp.eq.s32.totalorder %s20, 1
      %p43 = por %p41, %p42
      %p45 = scmp.ne.s32.totalorder %s28, %s44
      %p46 = scmp.eq.s32.totalorder %s20, 0
      %p47 = por %p45, %p46
      %s49 = sadd.s32 %s48, 1
      %p52 = scmp.eq.s32.totalorder %s14, 1
      %p53 = scmp.ne.s32.totalorder %s48, %s50
      %p54 = scmp.eq.s32.totalorder %s14, 0
      %p55 = por %p53, %p54
      %p56 = scmp.ne.s32.totalorder %s48, %s50
      %p57 = scmp.eq.s32.totalorder %s19, 1
      %p58 = por %p56, %p57
      %p59 = scmp.ne.s32.totalorder %s50, %s51
      %p60 = scmp.eq.s32.totalorder %s19, 0
      %p61 = por %p59, %p60
      %p62 = scmp.ne.s32.totalorder %s50, %s51
      %p63 = scmp.eq.s32.totalorder %s20, 1
      %p64 = por %p62, %p63
      %p66 = scmp.ne.s32.totalorder %s51, %s65
      %p67 = scmp.eq.s32.totalorder %s20, 0
      %p68 = por %p66, %p67
      %s70 = sadd.s32 %s69, 1
      %p73 = scmp.eq.s32.totalorder %s14, 1
      %p74 = scmp.ne.s32.totalorder %s69, %s71
      %p75 = scmp.eq.s32.totalorder %s14, 0
      %p76 = por %p74, %p75
      %p77 = scmp.ne.s32.totalorder %s69, %s71
      %p78 = scmp.eq.s32.totalorder %s19, 1
      %p79 = por %p77, %p78
      %p80 = scmp.ne.s32.totalorder %s71, %s72
      %p81 = scmp.eq.s32.totalorder %s19, 0
      %p82 = por %p80, %p81
      %p83 = scmp.ne.s32.totalorder %s71, %s72
      %p84 = scmp.eq.s32.totalorder %s20, 1
      %p85 = por %p83, %p84
      %p87 = scmp.ne.s32.totalorder %s72, %s86
      %p88 = scmp.eq.s32.totalorder %s20, 0
      %p89 = por %p87, %p88
      %s91 = sadd.s32 %s90, 1
      %p94 = scmp.eq.s32.totalorder %s14, 1
      %p95 = scmp.ne.s32.totalorder %s90, %s92
      %p96 = scmp.eq.s32.totalorder %s14, 0
      %p97 = por %p95, %p96
      %p98 = scmp.ne.s32.totalorder %s90, %s92
      %p99 = scmp.eq.s32.totalorder %s19, 1
      %p100 = por %p98, %p99
      %p101 = scmp.ne.s32.totalorder %s92, %s93
      %p102 = scmp.eq.s32.totalorder %s19, 0
      %p103 = por %p101, %p102
      %p104 = scmp.ne.s32.totalorder %s92, %s93
      %p105 = scmp.eq.s32.totalorder %s20, 1
      %p106 = por %p104, %p105
      %p108 = scmp.ne.s32.totalorder %s93, %s107
      %p109 = scmp.eq.s32.totalorder %s20, 0
      %p110 = por %p108, %p109
      %s112 = sadd.s32 %s111, 1
      %p115 = scmp.eq.s32.totalorder %s14, 1
      %p116 = scmp.ne.s32.totalorder %s111, %s113
      %p117 = scmp.eq.s32.totalorder %s14, 0
      %p118 = por %p116, %p117
      %p119 = scmp.ne.s32.totalorder %s111, %s113
      %p120 = scmp.eq.s32.totalorder %s19, 1
      %p121 = por %p119, %p120
      %p122 = scmp.ne.s32.totalorder %s113, %s114
      %p123 = scmp.eq.s32.totalorder %s19, 0
      %p124 = por %p122, %p123
      %p125 = scmp.ne.s32.totalorder %s113, %s114
      %p126 = scmp.eq.s32.totalorder %s20, 1
      %p127 = por %p125, %p126
      %p129 = scmp.ne.s32.totalorder %s114, %s128
      %p130 = scmp.eq.s32.totalorder %s20, 0
      %p131 = por %p129, %p130
      %s132 = ssub.s32 %s14, %s21
      %p133 = scmp.eq.s32.totalorder %s132, 0
      %s135 = sadd.s32 %s134, 1
      %s136 = scalar_select %p133, %s134, %s135
      %p139 = pneg %p133
      %p140 = scmp.eq.s32.totalorder %s14, 1
      %p141 = por %p139, %p140
      %p142 = scmp.ne.s32.totalorder %s134, %s137
      %p143 = scmp.eq.s32.totalorder %s14, 0
      %p144 = por %p142, %p143
      %p145 = scmp.ne.s32.totalorder %s134, %s137
      %p146 = scmp.eq.s32.totalorder %s19, 1
      %p147 = por %p145, %p146
      %p148 = scmp.ne.s32.totalorder %s137, %s138
      %p149 = scmp.eq.s32.totalorder %s19, 0
      %p150 = por %p148, %p149
      %p151 = scmp.ne.s32.totalorder %s137, %s138
      %p152 = scmp.eq.s32.totalorder %s20, 1
      %p153 = por %p151, %p152
      %p155 = scmp.ne.s32.totalorder %s138, %s154
      %p156 = scmp.eq.s32.totalorder %s20, 0
      %p157 = por %p155, %p156
      %p158 = scmp.le.s32.totalorder 1, %s14
      %p159 = scmp.lt.s32.totalorder %s14, 3
      %p160 = pnand %p158, %p159
      %p161 = pneg %p160
      // Predicated region
      $region9: #{tdnn_block.1} parent=5 // pred_check
        _
      $region10: #{tdnn_block.1} parent=5 // pred_check_branch
        %163 = sbr.rel (%p160) target = $region12
      $region11: #{tdnn_block.1} parent=5 // pred_region
        %s164 = ssub.s32 %s14, 1
        // Predicated region
        $region13: #{tdnn_block.1} parent=11 // pred_check
          %p165 = pneg %p61
        $region14: #{tdnn_block.1} parent=11 // pred_check_branch
          %167 = sbr.rel (%p165) target = $region16
        $region15: #{tdnn_block.1} parent=11 // pred_region
          _
        $region16: #{tdnn_block.1} parent=11 // pred_fallthru
          _
        // Predicated region
        $region17: #{tdnn_block.1} parent=11 // pred_check
          %p168 = pneg %p82
        $region18: #{tdnn_block.1} parent=11 // pred_check_branch
          %170 = sbr.rel (%p168) target = $region20
        $region19: #{tdnn_block.1} parent=11 // pred_region
          _
        $region20: #{tdnn_block.1} parent=11 // pred_fallthru
          _
        // Predicated region
        $region21: #{tdnn_block.1} parent=11 // pred_check
          %p171 = pneg %p103
        $region22: #{tdnn_block.1} parent=11 // pred_check_branch
          %173 = sbr.rel (%p171) target = $region24
        $region23: #{tdnn_block.1} parent=11 // pred_region
          _
        $region24: #{tdnn_block.1} parent=11 // pred_fallthru
          _
        // Predicated region
        $region25: #{tdnn_block.1} parent=11 // pred_check
          %p174 = pneg %p124
        $region26: #{tdnn_block.1} parent=11 // pred_check_branch
          %176 = sbr.rel (%p174) target = $region28
        $region27: #{tdnn_block.1} parent=11 // pred_region
          _
        $region28: #{tdnn_block.1} parent=11 // pred_fallthru
          _
      $region12: #{tdnn_block.1} parent=5 // pred_fallthru
        _
      %p177 = scmp.lt.s32.totalorder %s14, 2
      // Predicated region
      $region29: #{tdnn_block.1} parent=5 // pred_check
        %p178 = pneg %p177
      $region30: #{tdnn_block.1} parent=5 // pred_check_branch
        %180 = sbr.rel (%p178) target = $region32
      $region31: #{tdnn_block.1} parent=5 // pred_region
        // Predicated region
        $region33: #{tdnn_block.1} parent=31 // pred_check
          %p181 = pneg %p34
        $region34: #{tdnn_block.1} parent=31 // pred_check_branch
          %183 = sbr.rel (%p181) target = $region36
        $region35: #{tdnn_block.1} parent=31 // pred_region
          %p184 = scmp.lt.s32.totalorder %s14, 1
          %s185 = scalar_select %p184, %s14, 1
          %s186 = smul.addr %s185, 2
          %s187 = smul.addr %s186, 8
          %s188 = scalar_lea.vmem %s0, %s187
        $region36: #{tdnn_block.1} parent=31 // pred_fallthru
          _
      $region32: #{tdnn_block.1} parent=5 // pred_fallthru
        _
      %p189 = scmp.le.s32.totalorder 1, %s14
      %p190 = scmp.lt.s32.totalorder %s14, 3
      %p191 = pnand %p189, %p190
      %p192 = pneg %p191
      // Predicated region
      $region37: #{tdnn_block.1} parent=5 // pred_check
        _
      $region38: #{tdnn_block.1} parent=5 // pred_check_branch
        %194 = sbr.rel (%p191) target = $region40
      $region39: #{tdnn_block.1} parent=5 // pred_region
        %s195 = ssub.s32 %s14, 1
        %p196 = scmp.lt.s32.totalorder %s19, 1
        %s197 = scalar_select %p196, %s19, 1
        %s198 = smul.addr %s197, 2
        %s199 = smul.addr %s198, 8
        %s200 = scalar_lea.vmem %s0, %s199
        %p201 = pneg %p40
        %p202 = pneg %p37
        %p203 = pneg %p61
        %p204 = pneg %p58
        %p205 = pneg %p82
        %p206 = pneg %p79
        %p207 = pneg %p103
        %p208 = pneg %p100
        %p209 = pneg %p124
        %p210 = pneg %p121
        %p211 = pneg %p150
        %p212 = pneg %p147
        %s213 = sand.u32 %s137, 1
        %s214 = scalar_lea.sflag [#allocation3], %s213
        %s215 = sand.u32 %s137, 1
        %s216 = smul.addr %s215, 16
        %s217 = scalar_lea.vmem [#allocation2], %s216
        %p218 = scmp.lt.s32.totalorder %s19, 1
        %s219 = scalar_select %p218, %s19, 1
        %s220 = smul.addr %s219, 2
        %s221 = smul.addr %s220, 8
        %s222 = scalar_lea.vmem %s0, %s221
        %v224 = vld [vmem:[%s222] sm:$0xff]
        %v225 = vld [vmem:[%s222 + $0x8] sm:$0xff]
        %v226 = vld [vmem:[%s2] sm:$0x7]
        %v227 = vlaneseq
        %v228 = vshrl.u32 %v227, 7
        %v229 = vadd.s32 %v228, 8
        %vm230 = vcmp.ge.s32.totalorder %v228, 1
        %vm231 = vcmp.ge.s32.totalorder %v229, 1
        %v232 = vrot.slane %v224, 7
        %v233 = vrot.slane %v225, 7
        %vm234 = vcmp.lt.s32.totalorder %v228, 1
        %v235 = vsel %vm234, %v232, %v233
        %v236 = vsel %vm234, %v233, %v232
        %v237 = vsel %vm230, %v236, 0.0
        %v238 = vsel %vm231, %v235, 0.0
        %vm239 = vcmp.lt.s32.totalorder %v228, 15
        %vm240 = vcmp.lt.s32.totalorder %v229, 15
        %v241 = vrot.slane %v224, 1
        %v242 = vrot.slane %v225, 1
        %vm243 = vcmp.lt.s32.totalorder %v228, 7
        %v244 = vsel %vm243, %v241, %v242
        %v245 = vsel %vm243, %v242, %v241
        %v246 = vsel %vm239, %v244, 0.0
        %v247 = vsel %vm240, %v245, 0.0
        %250 = vrot.lane.b32.xlu0 %v224, 32
        %v251 = vpop.permute.xlu0 %250
        %252 = vrot.lane.b32.xlu0 %v225, 32
        %v253 = vpop.permute.xlu0 %252
        %258 = vrot.lane.b32.xlu0 %v246, 64
        %v259 = vpop.permute.xlu0 %258
        %260 = vrot.lane.b32.xlu0 %v247, 64
        %v261 = vpop.permute.xlu0 %260
        %vm264 = vcmask 261120
        %v265 = vsel %vm264, %v237, %v251
        %v266 = vsel %vm264, %v238, %v253
        %vm267 = vcmask 523264
        %v268 = vsel %vm267, %v265, %v259
        %v269 = vsel %vm267, %v266, %v261
        %v270 = vpack.c.bf16 %v269, %v268
        %v271 = vld [vmem:[%s1] sm:$0xf]
        %v272 = vld [vmem:[%s1 + $0x4] sm:$0xf]
        %v273 = vld [vmem:[%s1 + $0x8] sm:$0xf]
        %v274 = vld [vmem:[%s1 + $0xc] sm:$0xf]
        %v275 = vld [vmem:[%s1 + $0x10] sm:$0xf]
        %v276 = vld [vmem:[%s1 + $0x14] sm:$0xf]
        %v277 = vld [vmem:[%s1 + $0x18] sm:$0xf]
        %v278 = vld [vmem:[%s1 + $0x1c] sm:$0xf]
        %v279 = vld [vmem:[%s1 + $0x20] sm:$0xf]
        %v280 = vld [vmem:[%s1 + $0x24] sm:$0xf]
        %v281 = vld [vmem:[%s1 + $0x28] sm:$0xf]
        %v282 = vld [vmem:[%s1 + $0x2c] sm:$0xf]
        %v283 = vlaneseq
        %v284 = vshrl.u32 %v283, 7
        %v285 = vsub.s32 0, %v284
        %v286 = vrot.slane %v226, %v285
        %v299 = vunpack.c.l.b16 %v271
        %v300 = vunpack.c.l.b16 %v272
        %v301 = vunpack.c.l.b16 %v273
        %v302 = vunpack.c.l.b16 %v274
        %v303 = vunpack.c.l.b16 %v275
        %v304 = vunpack.c.l.b16 %v276
        %v305 = vunpack.c.l.b16 %v277
        %v306 = vunpack.c.l.b16 %v278
        %v307 = vunpack.c.l.b16 %v279
        %v308 = vunpack.c.l.b16 %v280
        %v309 = vunpack.c.l.b16 %v281
        %v310 = vunpack.c.l.b16 %v282
        %v311 = vpack.c.b16 %v300, %v299
        %v312 = vpack.c.b16 %v302, %v301
        %v313 = vpack.c.b16 %v304, %v303
        %v314 = vpack.c.b16 %v306, %v305
        %v315 = vpack.c.b16 %v308, %v307
        %v316 = vpack.c.b16 %v310, %v309
        %vm323 = vcmask 785408
        %v325 = vsel %vm323, %v270, 0
        %327 = vmatprep.subr.bf16.mxu0 0
        %328 = vmatpush1.bf16.msra.mxu0 %v311
        %329 = vmatprep.subr.bf16.mxu0 0
        %330 = vmatpush1.bf16.msra.mxu0 %v312
        %331 = vmatprep.subr.bf16.mxu0 0
        %332 = vmatpush1.bf16.msra.mxu0 %v313
        %333 = vmatprep.subr.bf16.mxu0 0
        %334 = vmatpush1.bf16.msra.mxu0 %v314
        %335 = vmatprep.subr.bf16.mxu0 0
        %336 = vmatpush1.bf16.msra.mxu0 %v315
        %337 = vmatprep.subr.bf16.mxu0 0
        %338 = vmatpush1.bf16.msra.mxu0 %v316
        %339 = vmatprep.subr.bf16.mxu0 0
        %340 = vmatpush1.bf16.msra.mxu0 0
        %341 = vmatprep.subr.bf16.mxu0 0
        %342 = vmatpush1.bf16.msra.mxu0 0
        %343 = vmatprep.subr.bf16.mxu0 0
        %344 = vmatpush1.bf16.msra.mxu0 0
        %345 = vmatprep.subr.bf16.mxu0 0
        %346 = vmatpush1.bf16.msra.mxu0 0
        %347 = vmatprep.subr.bf16.mxu0 0
        %348 = vmatpush1.bf16.msra.mxu0 0
        %349 = vmatprep.subr.bf16.mxu0 0
        %350 = vmatpush1.bf16.msra.mxu0 0
        %351 = vmatprep.subr.bf16.mxu0 0
        %352 = vmatpush1.bf16.msra.mxu0 0
        %353 = vmatprep.subr.bf16.mxu0 0
        %354 = vmatpush1.bf16.msra.mxu0 0
        %355 = vmatprep.subr.bf16.mxu0 0
        %356 = vmatpush1.bf16.msra.mxu0 0
        %357 = vmatprep.subr.bf16.mxu0 0
        %358 = vmatpush1.bf16.msra.mxu0 0
        %359 = vmatprep.mubr.bf16.mxu0 0
        %360 = vmatmul.mubr.bf16.gmra.mrb[0].mxu0 %v325
        %v361 = vpop.f32.mrb[0].mxu0
        %v362 = vadd.f32 %v286, %v361
        %v363 = vpop.f32.mrb[0].mxu0
        %v364 = vpop.f32.mrb[0].mxu0
        %v365 = vadd.f32 %v286, %v364
        %v366 = vpop.f32.mrb[0].mxu0
        %367 = vdwg.mxu0
        %v368 = vmax.f32 %v362, 0.0
        %v369 = vmax.f32 %v365, 0.0
        %v370 = vlaneseq
        %v371 = vshrl.u32 %v370, 7
        %v372 = vsub.s32 1, %v371
        %v373 = vrot.slane %v226, %v372
        %v374 = vmul.f32 %v368, %v373
        %v375 = vmul.f32 %v369, %v373
        %v376 = vlaneseq
        %v377 = vshrl.u32 %v376, 7
        %v378 = vsub.s32 2, %v377
        %v379 = vrot.slane %v226, %v378
        %v380 = vadd.f32 %v374, %v379
        %v381 = vadd.f32 %v375, %v379
        %v382 = vld [vmem:[%s4] sm:$0x7]
        %v383 = vrot.slane %v380, 7
        %v384 = vrot.slane %v381, 7
        %v385 = vsel %vm234, %v383, %v384
        %v386 = vsel %vm234, %v384, %v383
        %v387 = vsel %vm230, %v386, 0.0
        %v388 = vsel %vm231, %v385, 0.0
        %v389 = vrot.slane %v380, 1
        %v390 = vrot.slane %v381, 1
        %v391 = vsel %vm243, %v389, %v390
        %v392 = vsel %vm243, %v390, %v389
        %v393 = vsel %vm239, %v391, 0.0
        %v394 = vsel %vm240, %v392, 0.0
        %397 = vrot.lane.b32.xlu0 %v380, 32
        %v398 = vpop.permute.xlu0 %397
        %399 = vrot.lane.b32.xlu0 %v381, 32
        %v400 = vpop.permute.xlu0 %399
        %405 = vrot.lane.b32.xlu0 %v393, 64
        %v406 = vpop.permute.xlu0 %405
        %407 = vrot.lane.b32.xlu0 %v394, 64
        %v408 = vpop.permute.xlu0 %407
        %v411 = vsel %vm264, %v387, %v398
        %v412 = vsel %vm264, %v388, %v400
        %v413 = vsel %vm267, %v411, %v406
        %v414 = vsel %vm267, %v412, %v408
        %v415 = vpack.c.bf16 %v414, %v413
        %v416 = vld [vmem:[%s3] sm:$0xf]
        %v417 = vld [vmem:[%s3 + $0x4] sm:$0xf]
        %v418 = vld [vmem:[%s3 + $0x8] sm:$0xf]
        %v419 = vld [vmem:[%s3 + $0xc] sm:$0xf]
        %v420 = vld [vmem:[%s3 + $0x10] sm:$0xf]
        %v421 = vld [vmem:[%s3 + $0x14] sm:$0xf]
        %v422 = vld [vmem:[%s3 + $0x18] sm:$0xf]
        %v423 = vld [vmem:[%s3 + $0x1c] sm:$0xf]
        %v424 = vld [vmem:[%s3 + $0x20] sm:$0xf]
        %v425 = vld [vmem:[%s3 + $0x24] sm:$0xf]
        %v426 = vld [vmem:[%s3 + $0x28] sm:$0xf]
        %v427 = vld [vmem:[%s3 + $0x2c] sm:$0xf]
        %v428 = vlaneseq
        %v429 = vshrl.u32 %v428, 7
        %v430 = vsub.s32 0, %v429
        %v431 = vrot.slane %v382, %v430
        %v444 = vunpack.c.l.b16 %v416
        %v445 = vunpack.c.l.b16 %v417
        %v446 = vunpack.c.l.b16 %v418
        %v447 = vunpack.c.l.b16 %v419
        %v448 = vunpack.c.l.b16 %v420
        %v449 = vunpack.c.l.b16 %v421
        %v450 = vunpack.c.l.b16 %v422
        %v451 = vunpack.c.l.b16 %v423
        %v452 = vunpack.c.l.b16 %v424
        %v453 = vunpack.c.l.b16 %v425
        %v454 = vunpack.c.l.b16 %v426
        %v455 = vunpack.c.l.b16 %v427
        %v456 = vpack.c.b16 %v445, %v444
        %v457 = vpack.c.b16 %v447, %v446
        %v458 = vpack.c.b16 %v449, %v448
        %v459 = vpack.c.b16 %v451, %v450
        %v460 = vpack.c.b16 %v453, %v452
        %v461 = vpack.c.b16 %v455, %v454
        %v469 = vsel %vm323, %v415, 0
        %471 = vmatprep.subr.bf16.mxu0 0
        %472 = vmatpush1.bf16.msra.mxu0 %v456
        %473 = vmatprep.subr.bf16.mxu0 0
        %474 = vmatpush1.bf16.msra.mxu0 %v457
        %475 = vmatprep.subr.bf16.mxu0 0
        %476 = vmatpush1.bf16.msra.mxu0 %v458
        %477 = vmatprep.subr.bf16.mxu0 0
        %478 = vmatpush1.bf16.msra.mxu0 %v459
        %479 = vmatprep.subr.bf16.mxu0 0
        %480 = vmatpush1.bf16.msra.mxu0 %v460
        %481 = vmatprep.subr.bf16.mxu0 0
        %482 = vmatpush1.bf16.msra.mxu0 %v461
        %483 = vmatprep.subr.bf16.mxu0 0
        %484 = vmatpush1.bf16.msra.mxu0 0
        %485 = vmatprep.subr.bf16.mxu0 0
        %486 = vmatpush1.bf16.msra.mxu0 0
        %487 = vmatprep.subr.bf16.mxu0 0
        %488 = vmatpush1.bf16.msra.mxu0 0
        %489 = vmatprep.subr.bf16.mxu0 0
        %490 = vmatpush1.bf16.msra.mxu0 0
        %491 = vmatprep.subr.bf16.mxu0 0
        %492 = vmatpush1.bf16.msra.mxu0 0
        %493 = vmatprep.subr.bf16.mxu0 0
        %494 = vmatpush1.bf16.msra.mxu0 0
        %495 = vmatprep.subr.bf16.mxu0 0
        %496 = vmatpush1.bf16.msra.mxu0 0
        %497 = vmatprep.subr.bf16.mxu0 0
        %498 = vmatpush1.bf16.msra.mxu0 0
        %499 = vmatprep.subr.bf16.mxu0 0
        %500 = vmatpush1.bf16.msra.mxu0 0
        %501 = vmatprep.subr.bf16.mxu0 0
        %502 = vmatpush1.bf16.msra.mxu0 0
        %503 = vmatprep.mubr.bf16.mxu0 0
        %504 = vmatmul.mubr.bf16.gmra.mrb[0].mxu0 %v469
        %v505 = vpop.f32.mrb[0].mxu0
        %v506 = vadd.f32 %v431, %v505
        %v507 = vpop.f32.mrb[0].mxu0
        %v508 = vpop.f32.mrb[0].mxu0
        %v509 = vadd.f32 %v431, %v508
        %v510 = vpop.f32.mrb[0].mxu0
        %511 = vdwg.mxu0
        %v512 = vmax.f32 %v506, 0.0
        %v513 = vmax.f32 %v509, 0.0
        %v514 = vlaneseq
        %v515 = vshrl.u32 %v514, 7
        %v516 = vsub.s32 1, %v515
        %v517 = vrot.slane %v382, %v516
        %v518 = vmul.f32 %v512, %v517
        %v519 = vmul.f32 %v513, %v517
        %v520 = vlaneseq
        %v521 = vshrl.u32 %v520, 7
        %v522 = vsub.s32 2, %v521
        %v523 = vrot.slane %v382, %v522
        %v524 = vadd.f32 %v518, %v523
        %v525 = vadd.f32 %v519, %v523
        %v526 = vadd.f32 %v524, %v224
        %v527 = vadd.f32 %v525, %v225
        %528 = vst.msk [vmem:[%s217] sm:$0xff] %vm264, %v526
        %529 = vst.msk [vmem:[%s217 + $0x8] sm:$0xff] %vm264, %v527
        %s530 = sand.u32 %s137, 1
        %s531 = scalar_lea.sflag [#allocation3], %s530
        %s532 = sand.u32 %s137, 1
        %s533 = smul.addr %s532, 16
        %s534 = scalar_lea.vmem [#allocation2], %s533
        // Predicated region
        $region41: #{tdnn_block.1} parent=39 // pred_check
          %p535 = pneg %p147
        $region42: #{tdnn_block.1} parent=39 // pred_check_branch
          %537 = sbr.rel (%p535) target = $region44
        $region43: #{tdnn_block.1} parent=39 // pred_region
          %s539 = ssub.s32 256, 256
          %540 = vsyncadd %s531, %s539
          %s541 = smul.addr %s19, 2
          %s542 = smul.addr %s541, 128
          %s543 = scalar_lea.hbm %s5, %s542
          %s544 = sshll.u32 %s534, 4
          %s545 = int_to_ptr.vmem [resolvable:$true] %s544
          %550 = dma.vmem_to_hbm [thread:$0]  %s545, 256, %s543, %s531, 128, 128, 8
        $region44: #{tdnn_block.1} parent=39 // pred_fallthru
          _
      $region40: #{tdnn_block.1} parent=5 // pred_fallthru
        _
      %p551 = scmp.le.s32.totalorder 2, %s14
      // Predicated region
      $region45: #{tdnn_block.1} parent=5 // pred_check
        %p552 = pneg %p551
      $region46: #{tdnn_block.1} parent=5 // pred_check_branch
        %554 = sbr.rel (%p552) target = $region48
      $region47: #{tdnn_block.1} parent=5 // pred_region
        %s555 = ssub.s32 %s14, 2
        // Predicated region
        $region49: #{tdnn_block.1} parent=47 // pred_check
          %p556 = pneg %p153
        $region50: #{tdnn_block.1} parent=47 // pred_check_branch
          %558 = sbr.rel (%p556) target = $region52
        $region51: #{tdnn_block.1} parent=47 // pred_region
          %s559 = sand.u32 %s138, 1
          %s560 = scalar_lea.sflag [#allocation3], %s559
          %s561 = sand.u32 %s138, 1
          %s562 = smul.addr %s561, 16
          %s563 = scalar_lea.vmem [#allocation2], %s562
          %564 = dma.done %s560, 256
        $region52: #{tdnn_block.1} parent=47 // pred_fallthru
          _
      $region48: #{tdnn_block.1} parent=5 // pred_fallthru
        _
    $region6: #{tdnn_block.1} parent=1 // loop_footer
      %s18 = sadd.s32 1, %s14
    $region7: #{tdnn_block.1} parent=1 // loop_footer_branch
      %13 = sbr.rel target = $region3
    $region8: #{tdnn_block.1} parent=1 // loop_exit
      _
    %565 = vsyncpa [#allocation3], 1
    %s566 = scalar_lea.sflag [#allocation3], 1
    %567 = vsyncpa %s566, 1

</llo_original>
